<compile_context>
chip_gen: v7x
topology: tpu7x:2x2x1
jax: 0.10.0
libtpu: 0.0.40
codegen_flags: <defaults>
</compile_context>

<pallas_src>
import functools

import numpy as np
import jax
import jax.numpy as jnp
from jax.experimental import pallas as pl
from jax.experimental.pallas import tpu as pltpu


# ----------------------------------------------------------------------------
# Kernel 1: row L2-normalization, temperature folding, bf16 cast, lane padding.
# ----------------------------------------------------------------------------
def _normalize_kernel(z_ref, zn_ref, *, inv_sqrt_temp, eps, d, dp):
    x = z_ref[...].astype(jnp.float32)                        # (TM1, D)
    ssq = jnp.sum(x * x, axis=-1, keepdims=True)
    # zn = z / max(||z||, eps), then * 1/sqrt(T) so zn·zn^T already carries 1/T.
    inv = jax.lax.rsqrt(jnp.maximum(ssq, eps * eps)) * inv_sqrt_temp
    y = (x * inv).astype(zn_ref.dtype)
    if dp == d:
        zn_ref[...] = y
    else:
        # Zero the lane padding in-kernel instead of materializing a padded copy.
        zn_ref[...] = jnp.zeros(zn_ref.shape, zn_ref.dtype)
        zn_ref[:, 0:d] = y


# ----------------------------------------------------------------------------
# Kernel 2: tiled similarity (optional bf16 output) + static-max sumexp
#           + per-row NT-Xent loss terms.
#   grid = (num_row_tiles, num_col_tiles); column axis innermost ("arbitrary").
# ----------------------------------------------------------------------------
def _sim_loss_kernel(zrow_ref, zpair_ref, zcol_ref, *refs,
                     m_static, bf16_exp, with_sim):
    if with_sim:
        sim_ref, loss_ref, l_sc = refs
    else:
        loss_ref, l_sc = refs

    j = pl.program_id(1)

    @pl.when(j == 0)
    def _init():
        l_sc[...] = jnp.zeros(l_sc.shape, jnp.float32)

    # (TM, TN) similarity tile: bf16 operands, f32 accumulation on the MXU.
    s = jax.lax.dot_general(
        zrow_ref[...], zcol_ref[...],
        dimension_numbers=(((1,), (1,)), ((), ())),
        preferred_element_type=jnp.float32)
    if with_sim:
        sim_ref[...] = s.astype(sim_ref.dtype)                # bf16 writeback

    # Static max: temperature is folded into both operands, so s <= 1/T.
    sm = s - m_static
    if bf16_exp:
        # v6e/v7x EUP has a bf16 path; sum in f32.
        p = jnp.exp(sm.astype(jnp.bfloat16)).astype(jnp.float32)
    else:
        p = jnp.exp(sm)
    l_sc[...] += jnp.sum(p, axis=-1, keepdims=True)

    @pl.when(j == pl.num_programs(1) - 1)
    def _finalize():
        zr = zrow_ref[...].astype(jnp.float32)                # (TM, Dp)
        zp = zpair_ref[...].astype(jnp.float32)
        pos = jnp.sum(zr * zp, axis=-1, keepdims=True)        # sim[r, pair(r)]
        diag = jnp.sum(zr * zr, axis=-1, keepdims=True)       # sim[r, r] ≈ 1/T
        # Remove the diagonal contribution from the full-row sumexp.
        # NOTE: the diagonal is (nearly) the row max, so this subtraction can
        # lose precision only for fully degenerate rows (clamped at 1e-30).
        l = jnp.maximum(l_sc[...] - jnp.exp(diag - m_static), 1e-30)
        # Per-row cross-entropy with label 0: logsumexp_{c != r} - positive.
        loss_ref[...] = jnp.log(l) + m_static - pos


def _pick_tile(n, cap, quantum):
    """Largest t <= cap with n % t == 0 and t a multiple of `quantum`
    (or the full extent n when n <= cap / no divisor exists)."""
    if n <= cap:
        return n
    t = (cap // quantum) * quantum
    while t >= quantum:
        if n % t == 0:
            return t
        t -= quantum
    return n


def _default_bf16_exp():
    """bf16 EUP path exists on v6e / v7x; v5e and older have no bf16 EUP."""
    try:
        kind = jax.devices()[0].device_kind.lower()
    except Exception:
        return False
    return any(tag in kind for tag in ("v6", "v7", "7x"))


# ----------------------------------------------------------------------------
# Forward wrapper: mirrors NT_Xent.forward -> (loss, logits, labels)
# ----------------------------------------------------------------------------
def nt_xent_forward(z_i, z_j, temperature, *, tile_rows=None, tile_cols=None,
                    bf16_exp=None, return_logits=True):
    b = z_i.shape[0]              # batch_size * world_size
    d = z_i.shape[1]
    n = 2 * b
    if bf16_exp is None:
        bf16_exp = _default_bf16_exp()

    z = jnp.concatenate([z_i, z_j], axis=0).astype(jnp.float32)     # (N, D)

    # Lane-pad the feature dim to a multiple of 128 (done inside kernel 1).
    dp = ((d + 127) // 128) * 128

    # Row tiles: keep >= 2 row tiles when possible (megacore) and quantum 16
    # for the bf16 output's (16, 128) sublane packing.
    tm = tile_rows if tile_rows is not None else _pick_tile(
        n, min(512, max(16, n // 2)), 16)
    tn = tile_cols if tile_cols is not None else _pick_tile(n, 1024, 128)
    assert n % tm == 0 and n % tn == 0, "tile sizes must divide N = 2*B"

    tm1 = _pick_tile(n, 1024, 16)        # kernel-1 row tile (elementwise only)

    # --- kernel 1: normalized, temperature-folded, bf16 embeddings ---------
    zn = pl.pallas_call(
        functools.partial(_normalize_kernel,
                          inv_sqrt_temp=float(1.0 / np.sqrt(temperature)),
                          eps=1e-8, d=d, dp=dp),
        out_shape=jax.ShapeDtypeStruct((n, dp), jnp.bfloat16),
        grid=(n // tm1,),
        in_specs=[pl.BlockSpec((tm1, d), lambda i: (i, 0))],
        out_specs=pl.BlockSpec((tm1, dp), lambda i: (i, 0)),
        compiler_params=pltpu.CompilerParams(
            dimension_semantics=("parallel",)),
    )(z)

    nrt, nct = n // tm, n // tn

    # Positive-pair rows zn[(r + b) % n]: read straight from zn with a shifted
    # block index when tm divides b; otherwise fall back to a single roll copy.
    if b % tm == 0:
        shift = b // tm
        pair_operand = zn
        pair_spec = pl.BlockSpec((tm, dp), lambda i, j: ((i + shift) % nrt, 0))
    else:
        pair_operand = jnp.roll(zn, -b, axis=0)
        pair_spec = pl.BlockSpec((tm, dp), lambda i, j: (i, 0))

    m_static = float(1.0 / temperature)

    row_spec = pl.BlockSpec((tm, dp), lambda i, j: (i, 0))
    col_spec = pl.BlockSpec((tn, dp), lambda i, j: (j, 0))
    loss_spec = pl.BlockSpec((tm, 1), lambda i, j: (i, 0))

    sim_bytes = n * n * 2 if return_logits else 0
    cost = pl.CostEstimate(
        flops=2 * n * n * dp + 4 * n * dp,
        transcendentals=n * n,
        bytes_accessed=(2 * n * dp * 2          # resident row + pair blocks (bf16)
                        + nrt * n * dp * 2      # streamed column blocks per row tile
                        + sim_bytes + n * 4))   # bf16 sim tiles + per-row loss

    kernel = functools.partial(_sim_loss_kernel, m_static=m_static,
                               bf16_exp=bool(bf16_exp), with_sim=return_logits)
    compiler_params = pltpu.CompilerParams(
        dimension_semantics=("parallel", "arbitrary"),
        vmem_limit_bytes=40 * 1024 * 1024)
    scratch = [pltpu.VMEM((tm, 1), jnp.float32)]              # running sumexp

    if return_logits:
        sim, loss_rows = pl.pallas_call(
            kernel,
            out_shape=(jax.ShapeDtypeStruct((n, n), jnp.bfloat16),
                       jax.ShapeDtypeStruct((n, 1), jnp.float32)),
            grid=(nrt, nct),
            in_specs=[row_spec, pair_spec, col_spec],
            out_specs=(pl.BlockSpec((tm, tn), lambda i, j: (i, j)), loss_spec),
            scratch_shapes=scratch,
            compiler_params=compiler_params,
            cost_estimate=cost,
        )(zn, pair_operand, zn)
    else:
        loss_rows = pl.pallas_call(
            kernel,
            out_shape=jax.ShapeDtypeStruct((n, 1), jnp.float32),
            grid=(nrt, nct),
            in_specs=[row_spec, pair_spec, col_spec],
            out_specs=loss_spec,
            scratch_shapes=scratch,
            compiler_params=compiler_params,
            cost_estimate=cost,
        )(zn, pair_operand, zn)

    loss = jnp.sum(loss_rows) / jnp.float32(n)

    # TODO(synk): torch returns int64 labels; JAX default (x64 off) gives int32.
    labels = jnp.zeros((n,), dtype=jnp.int32)

    if not return_logits:
        return loss, None, labels

    # --- glue: torch-layout (N, N-1) logits, no host O(N^2) constants ------
    rows = jnp.arange(n, dtype=jnp.int32)
    pair = (rows + b) % n
    c = (rows % b)[:, None]                                    # excluded cols {c, c+b}
    p = jnp.arange(n - 2, dtype=jnp.int32)[None, :]
    neg_idx = (p + (p >= c).astype(jnp.int32)
                 + (p >= c + (b - 1)).astype(jnp.int32))       # ascending, skip c & c+b
    full_idx = jnp.concatenate([pair[:, None], neg_idx], axis=1)   # (N, N-1)
    # Gather from the bf16 sim (half the bytes); present logits in f32.
    logits = jnp.take_along_axis(sim, full_idx, axis=1).astype(jnp.float32)
    return loss, logits, labels


# ----------------------------------------------------------------------------
# Pure references for correctness checks.
# ----------------------------------------------------------------------------
def _reference_f32(z_i, z_j, temperature):
    """Exact torch-equivalent forward in f32 (numpy)."""
    z_i = np.asarray(z_i, np.float32)
    z_j = np.asarray(z_j, np.float32)
    b = z_i.shape[0]
    n = 2 * b
    z = np.concatenate([z_i, z_j], axis=0)
    zn = z / np.maximum(np.linalg.norm(z, axis=-1, keepdims=True), 1e-8)
    sim = zn @ zn.T / temperature
    pair = (np.arange(n) + b) % n
    pos = sim[np.arange(n), pair]
    mask = np.ones((n, n), dtype=bool)
    np.fill_diagonal(mask, False)
    mask[np.arange(n), pair] = False
    negs = sim[mask].reshape(n, n - 2)
    logits = np.concatenate([pos[:, None], negs], axis=1)
    m = logits.max(axis=1, keepdims=True)
    lse = np.log(np.exp(logits - m).sum(axis=1)) + m[:, 0]
    loss = float(np.sum(lse - logits[:, 0]) / n)
    return loss, logits


def _reference_kernel_mirror(z_i, z_j, temperature, bf16_exp):
    """Reference mirroring the kernel numerics: bf16 operands, static max 1/T,
    diagonal subtraction, optional bf16 exp."""
    b = z_i.shape[0]
    n = 2 * b
    z = jnp.concatenate([z_i, z_j], axis=0).astype(jnp.float32)
    zn = z / jnp.maximum(jnp.linalg.norm(z, axis=-1, keepdims=True), 1e-8)
    znq = (zn * (1.0 / np.sqrt(temperature))).astype(jnp.bfloat16).astype(jnp.float32)
    sim = znq @ znq.T
    m = 1.0 / temperature
    sm = sim - m
    if bf16_exp:
        e = jnp.exp(sm.astype(jnp.bfloat16)).astype(jnp.float32)
    else:
        e = jnp.exp(sm)
    l_full = jnp.sum(e, axis=1)
    diag = jnp.sum(znq * znq, axis=1)
    l = jnp.maximum(l_full - jnp.exp(diag - m), 1e-30)
    pair = (jnp.arange(n) + b) % n
    pos = jnp.sum(znq * znq[pair], axis=1)
    return jnp.sum(jnp.log(l) + m - pos) / n


def _run_case(batch_size, world_size, emb_dim, temperature, seed,
              tile_rows=None, tile_cols=None):
    b = batch_size * world_size
    n = 2 * b
    key = jax.random.PRNGKey(seed)
    k1, k2 = jax.random.split(key)
    z_i = jax.random.normal(k1, (b, emb_dim), jnp.float32)
    z_j = jax.random.normal(k2, (b, emb_dim), jnp.float32)

    bf16_exp = _default_bf16_exp()
    loss, logits, labels = nt_xent_forward(z_i, z_j, temperature,
                                           tile_rows=tile_rows,
                                           tile_cols=tile_cols,
                                           bf16_exp=bf16_exp)
    jax.block_until_ready((loss, logits, labels))

    # Loss-only fast path (skips sim/logits materialization) must agree.
    loss_fast, _, _ = nt_xent_forward(z_i, z_j, temperature,
                                      tile_rows=tile_rows, tile_cols=tile_cols,
                                      bf16_exp=bf16_exp, return_logits=False)
    jax.block_until_ready(loss_fast)

    loss_f32, logits_f32 = _reference_f32(z_i, z_j, temperature)
    loss_mirror = jax.block_until_ready(
        _reference_kernel_mirror(z_i, z_j, temperature, bf16_exp))

    assert logits.shape == (n, n - 1)
    assert labels.shape == (n,) and labels.dtype == jnp.int32
    assert bool(jnp.all(labels == 0))
    np.testing.assert_allclose(np.asarray(loss), np.asarray(loss_fast),
                               rtol=0, atol=1e-4)
    # Tight check against a reference that mirrors the kernel's numerics.
    np.testing.assert_allclose(np.asarray(loss), np.asarray(loss_mirror),
                               rtol=0, atol=5e-3)
    # Looser checks against the exact f32 torch-equivalent (bf16 quantization).
    np.testing.assert_allclose(np.asarray(loss), loss_f32, rtol=0, atol=5e-2)
    np.testing.assert_allclose(np.asarray(logits), logits_f32, rtol=0, atol=6e-2)


if __name__ == "__main__":
    # Case A: tiny shape typical of the module's unit test (single-tile grid,
    # jnp.roll fallback for the pair operand since tm > b).
    _run_case(batch_size=4, world_size=1, emb_dim=32, temperature=0.5, seed=0)

    # Case B: exercises the tiled path — grid (4 row tiles, 2 column tiles),
    # the static-max accumulation across streamed column blocks, and the
    # roll-free shifted-BlockSpec pair operand (tm divides b).
    _run_case(batch_size=128, world_size=1, emb_dim=64, temperature=0.5, seed=1,
              tile_rows=64, tile_cols=128)

    print("KERNEL_OK")
</pallas_src>

<mosaic_0001>
module attributes {stable_mosaic.version = 11 : i64} {
  func.func @_normalize_kernel(%arg0: i32, %arg1: memref<8x32xf32, #tpu.memory_space<vmem>>, %arg2: memref<8x128xbf16, #tpu.memory_space<vmem>>) attributes {dimension_semantics = [#tpu.dimension_semantics<parallel>], iteration_bounds = array<i64: 1>, scalar_prefetch = 0 : i64, scratch_operands = 0 : i64, tpu.core_type = #tpu.core_type<tc>, window_params = [{transform_indices = @transform_0, window_bounds = array<i64: 8, 32>}, {transform_indices = @transform_1, window_bounds = array<i64: 8, 128>}]} {
    %c0 = arith.constant 0 : index
    %c0_0 = arith.constant 0 : index
    %0 = vector.load %arg1[%c0, %c0_0] : memref<8x32xf32, #tpu.memory_space<vmem>>, vector<8x32xf32>
    %1 = arith.mulf %0, %0 : vector<8x32xf32>
    %cst = arith.constant dense<0.000000e+00> : vector<8xf32>
    %2 = vector.multi_reduction <add>, %1, %cst [1] : vector<8x32xf32> to vector<8xf32>
    %3 = vector.shape_cast %2 : vector<8xf32> to vector<8x1xf32>
    %cst_1 = arith.constant 1.000000e-16 : f32
    %4 = vector.broadcast %cst_1 : f32 to vector<8x1xf32>
    %5 = arith.maximumf %3, %4 : vector<8x1xf32>
    %6 = math.rsqrt %5 : vector<8x1xf32>
    %cst_2 = arith.constant 1.41421354 : f32
    %7 = vector.broadcast %cst_2 : f32 to vector<8x1xf32>
    %8 = arith.mulf %6, %7 : vector<8x1xf32>
    %9 = vector.broadcast %8 : vector<8x1xf32> to vector<8x32xf32>
    %10 = arith.mulf %0, %9 : vector<8x32xf32>
    %11 = arith.truncf %10 : vector<8x32xf32> to vector<8x32xbf16>
    %cst_3 = arith.constant 0.000000e+00 : bf16
    %12 = vector.broadcast %cst_3 : bf16 to vector<8x128xbf16>
    %c0_4 = arith.constant 0 : index
    %c0_5 = arith.constant 0 : index
    %13 = vector.load %arg2[%c0_4, %c0_5] : memref<8x128xbf16, #tpu.memory_space<vmem>>, vector<8x128xbf16>
    tpu.vector_store %arg2[%c0_4, %c0_5], %12 {strides = array<i32>} : memref<8x128xbf16, #tpu.memory_space<vmem>>, vector<8x128xbf16>,
    %c0_6 = arith.constant 0 : index
    %c0_7 = arith.constant 0 : index
    %14 = vector.load %arg2[%c0_6, %c0_7] : memref<8x128xbf16, #tpu.memory_space<vmem>>, vector<8x32xbf16>
    tpu.vector_store %arg2[%c0_6, %c0_7], %11 {strides = array<i32>} : memref<8x128xbf16, #tpu.memory_space<vmem>>, vector<8x32xbf16>,
    return
  }
  func.func @transform_0(%arg0: i32) -> (i32, i32) {
    %c0_i32 = arith.constant 0 : i32
    %c0_i32_0 = arith.constant 0 : i32
    return %arg0, %c0_i32 : i32, i32
  }
  func.func @transform_1(%arg0: i32) -> (i32, i32) {
    %c0_i32 = arith.constant 0 : i32
    %c0_i32_0 = arith.constant 0 : i32
    return %arg0, %c0_i32 : i32, i32
  }
}

</mosaic_0001>

<llo_original>
// kernel: tpu_custom_call.1
$region0: #{tpu_custom_call.1}
  #allocation0 [shape = 'u32[]', space=smem, size = 0x4, offset = 0x4, fixed_abs, tag = 'smem constant byte address 0x4 - core index']
  #allocation1 [shape = 'u32[144,128]{1,0:T(1,128)}', space=vmem, size = 0x12000, scoped, tag = 'internal scratch']
  %s0 = inlined_call_operand.hbm [shape: f32[8,32], index: 0, kind: input, shape index: {}]
  %s1 = inlined_call_operand.hbm [shape: bf16[8,128], index: 1, kind: output, shape index: {}]
  %s2 = sld [smem:[#allocation0]]
  $region18: #{tpu_custom_call.1} parent=0
    _
  %s4 = ssub.s32 1, %s2
  %s5 = scalar_select 0, %s4, %s2
  $region1: #{tpu_custom_call.1} parent=0
    #allocation2 [shape = 'u8[4096]{0}', space=vmem, size = 0x1000, scoped, tag = 'input window, operand 0, single buffered']
    #allocation3 [shape = 's32[1]{0}', space=sflag, size = 0x4, scoped, tag = 'scoped memory for tpu_custom_call.1']
    #allocation4 [shape = 's32[1]{0}', space=sflag, size = 0x4, scoped, tag = 'scoped memory for tpu_custom_call.1']
    #allocation5 [shape = 'u8[2048]{0}', space=vmem, size = 0x800, scoped, tag = 'output window, operand 0, single buffered']
    %6 = vsyncpa [#allocation3], 0
    %7 = vsyncpa [#allocation4], 0
    // Predicated region
    $region2: #{tpu_custom_call.1} parent=1 // pred_check
      _
    $region3: #{tpu_custom_call.1} parent=1 // pred_check_branch
      %9 = sbr.rel (0) target = $region5
    $region4: #{tpu_custom_call.1} parent=1 // pred_region
      %s11 = ssub.s32 128, 128
      %12 = vsyncadd [#allocation3], %s11
      %s14 = sshll.u32 [#allocation2], 4
      %s15 = int_to_ptr.vmem [resolvable:$true] %s14
      %17 = dma.hbm_to_vmem [thread:$0]  %s0, 128, %s15, [#allocation3]
    $region5: #{tpu_custom_call.1} parent=1 // pred_fallthru
      _
    // Predicated region
    $region6: #{tpu_custom_call.1} parent=1 // pred_check
      _
    $region7: #{tpu_custom_call.1} parent=1 // pred_check_branch
      %19 = sbr.rel (0) target = $region9
    $region8: #{tpu_custom_call.1} parent=1 // pred_region
      %20 = dma.done [#allocation3], 128
    $region9: #{tpu_custom_call.1} parent=1 // pred_fallthru
      _
    %v22 = vld [vmem:[#allocation2] sm:$0xff]
    %v23 = vmul.f32 %v22, %v22
    %vm24 = vcmask 261120
    %v25 = vsel %vm24, %v23, 0.0
    %26 = vadd.xlane.f32.xlu0 %v25
    %v27 = vpop.xlane.xlu0 %26
    %v28 = vmax.f32 %v27, 1e-16
    %v29 = vrsqrt.pop %v28
    %v30 = vmul.f32 %v29, 1.4142135
    %v31 = vmul.f32 %v22, %v30
    %v32 = vpack.c.bf16 %v31, %v31
    %33 = vst [vmem:[#allocation5] sm:$0xf] 0
    %vm34 = vcmask 257024
    %35 = vst.msk [vmem:[#allocation5] sm:$0xf] %vm34, %v32
    // Predicated region
    $region10: #{tpu_custom_call.1} parent=1 // pred_check
      _
    $region11: #{tpu_custom_call.1} parent=1 // pred_check_branch
      %37 = sbr.rel (0) target = $region13
    $region12: #{tpu_custom_call.1} parent=1 // pred_region
      %s39 = ssub.s32 64, 64
      %40 = vsyncadd [#allocation4], %s39
      %s42 = sshll.u32 [#allocation5], 4
      %s43 = int_to_ptr.vmem [resolvable:$true] %s42
      %45 = dma.vmem_to_hbm [thread:$0]  %s43, 64, %s1, [#allocation4]
    $region13: #{tpu_custom_call.1} parent=1 // pred_fallthru
      _
    // Predicated region
    $region14: #{tpu_custom_call.1} parent=1 // pred_check
      _
    $region15: #{tpu_custom_call.1} parent=1 // pred_check_branch
      %47 = sbr.rel (0) target = $region17
    $region16: #{tpu_custom_call.1} parent=1 // pred_region
      %48 = dma.done [#allocation4], 64
    $region17: #{tpu_custom_call.1} parent=1 // pred_fallthru
      _
    %49 = vsyncpa [#allocation3], 1
    %50 = vsyncpa [#allocation4], 1

</llo_original>
